<compile_context>
chip_gen: v6e
topology: v6e:2x2x1
jax: 0.10.0
libtpu: 0.0.40
codegen_flags: <defaults>
</compile_context>

<pallas_src>
from functools import partial

import jax
import jax.numpy as jnp
from jax.experimental import pallas as pl
from jax.experimental.pallas import tpu as pltpu

# Synthetic "EDM net" schedule constants (typical EDM values).
NET_SIGMA_MIN = 0.002
NET_SIGMA_MAX = 80.0
SIGMA_DATA = 0.5


def _mc_score_kernel(coef_ref, x_ref, eps_ref, gbias_ref, dwg_ref, o_ref, *,
                     bb, c, use_mxu):
    """One grid step: a (bb*c, hw_tile) slab of the MC-mean score difference.

    out = dWg @ (c_in*x + k2*eps_sum) + gbias     (per packed batch row)
    with dWg = gain*(W_cond - W_uncond), gbias = gain*(db + Emb[y]),
    gain = c_out/sigma^2, k2 = c_in*sigma/n_samples.
    """
    c_in = coef_ref[0]
    k2 = coef_ref[1]

    x = x_ref[...]                       # (bb*c, hw_tile) f32
    eps = eps_ref[...]                   # (bb*c, hw_tile) f32
    # Elementwise path at full sublane occupancy (bb chosen so bb*c >= 8).
    u = c_in * x + k2 * eps

    dwg = dwg_ref[...]                   # (c, c) f32, gain folded in
    gb = gbias_ref[...]                  # (bb*c, 1) f32, gain folded in

    pieces = []
    for p in range(bb):
        up = u[p * c:(p + 1) * c, :]
        if use_mxu:
            # Wide channel mix: worth the MXU.
            fp = jnp.dot(dwg, up, preferred_element_type=jnp.float32)
        else:
            # Small-C channel mix on the VPU: C outer-product FMAs
            # (col_k (C,1) * row_k (1,hw)) instead of a >95%-padded MXU push.
            fp = dwg[:, 0:1] * up[0:1, :]
            for k in range(1, c):
                fp = fp + dwg[:, k:k + 1] * up[k:k + 1, :]
        pieces.append(fp)
    f = pieces[0] if bb == 1 else jnp.concatenate(pieces, axis=0)
    o_ref[...] = (f + gb).astype(o_ref.dtype)


def _device_tuning():
    """(vmem_limit_bytes, tensorcores_per_chip) — generation-aware, safe fallback."""
    kind = ""
    try:
        kind = jax.devices()[0].device_kind.lower()
    except Exception:
        pass
    if "v7" in kind or "7x" in kind:
        return 32 * 1024 * 1024, 2     # 64 MiB physical per TC, 2 TCs/chip
    if "v5" in kind or "v6" in kind:
        return 64 * 1024 * 1024, 1     # 128 MiB physical, single TC
    return 32 * 1024 * 1024, 1


def _pick_batch_block(batch, channels):
    """Smallest batch block BB with B % BB == 0 and BB*C a multiple of 8,
    so the elementwise/noise path fills >= 8 sublanes per vreg."""
    if channels % 8 == 0:
        return 1
    for bb in range(1, batch + 1):
        if batch % bb == 0 and (bb * channels) % 8 == 0:
            return bb
    return batch   # block first dim == full dim: always legal


def _pick_hw_tile(hw_p, row_block, batch_grid, vmem_budget_bytes, num_cores):
    """Largest 128-multiple tile of the (padded) spatial axis that fits the
    VMEM budget; on multi-TC parts also make sure the grid has enough points."""
    if hw_p % 128 != 0:
        return hw_p

    def step_bytes(t):
        # ~double-buffered x & eps inputs + output + live f32 intermediates.
        return 10 * row_block * t * 4

    tile = hw_p
    while tile % 256 == 0 and step_bytes(tile) > vmem_budget_bytes:
        tile //= 2
    if num_cores > 1:
        while (tile % 256 == 0 and tile > 512
               and batch_grid * (hw_p // tile) < 2 * num_cores):
            tile //= 2
    return tile


def score_y_x_pallas(params, x, y, key, *, t, n_samples,
                     sigma_min=0.002, sigma_max=80.0):
    """Equivalent of MC_Score_EDM.score_y_x: MC-mean of score_cond - score_uncond."""
    B, C, H, W = x.shape
    HW = H * W
    S = int(n_samples)
    assert S >= 1

    # sigma schedule (round_sigma is an identity conversion; both nets share
    # their schedule here, so sigma_cond == sigma_uncond always).
    smin = max(sigma_min, NET_SIGMA_MIN)
    smax = min(sigma_max, NET_SIGMA_MAX)
    sigma = (smax - smin) * jnp.float32(t) + smin
    c_out = sigma * SIGMA_DATA * jax.lax.rsqrt(sigma * sigma + SIGMA_DATA ** 2)
    c_in = jax.lax.rsqrt(SIGMA_DATA ** 2 + sigma * sigma)
    gain = c_out / (sigma * sigma)                     # score-difference prefactor
    # Runtime SMEM scalars: changes in t never trigger recompilation.
    coef = jnp.stack([c_in, c_in * sigma / S]).astype(jnp.float32)

    # Folded difference net, with gain folded in so the epilogue is one add.
    dwg = (gain * (params["w_cond"] - params["w_uncond"])).astype(jnp.float32)   # (C, C)
    db = params["b_cond"] - params["b_uncond"]                                   # (C, 1)
    # one_hot(y) @ embedding == row gather (glue, not hot path).
    # TODO(synk): a faithful CFG pair would also subtract the uncond net's
    # null-label embedding here; the synthetic uncond net has none.
    gbias = gain * (db[None, :, :] + params["emb_cond"][y][:, :, None])          # (B, C, 1)
    gbias = gbias.reshape(B * C, 1).astype(jnp.float32)

    # NC(HW) layout with batch*channel merged onto the sublane axis.
    x2 = x.reshape(B * C, HW).astype(jnp.float32)

    # By linearity of the difference net, the MC mean only needs the SUM of the
    # S iid noise draws, so the channel mix runs once and x is never replicated.
    # TODO(synk): for very large S, stream this sum instead of stacking S draws.
    eps_sum = jax.random.normal(key, (S, B * C, HW), jnp.float32).sum(axis=0)

    # Pad the lane axis to a multiple of 128 so stores stay unmasked.
    pad = (-HW) % 128
    HWP = HW + pad
    if pad:
        x2 = jnp.pad(x2, ((0, 0), (0, pad)))
        eps_sum = jnp.pad(eps_sum, ((0, 0), (0, pad)))

    vmem_limit, n_cores = _device_tuning()
    BB = _pick_batch_block(B, C)
    hw_tile = _pick_hw_tile(HWP, BB * C, B // BB, vmem_limit // 2, n_cores)
    use_mxu = C >= 64   # degenerate contractions stay off the MXU

    kernel = partial(_mc_score_kernel, bb=BB, c=C, use_mxu=use_mxu)
    out = pl.pallas_call(
        kernel,
        out_shape=jax.ShapeDtypeStruct((B * C, HWP), jnp.float32),
        grid=(B // BB, HWP // hw_tile),
        in_specs=[
            pl.BlockSpec(memory_space=pltpu.MemorySpace.SMEM),          # coef
            pl.BlockSpec((BB * C, hw_tile), lambda b, j: (b, j)),       # x
            pl.BlockSpec((BB * C, hw_tile), lambda b, j: (b, j)),       # eps_sum
            pl.BlockSpec((BB * C, 1), lambda b, j: (b, 0)),             # gain*bias
            pl.BlockSpec((C, C), lambda b, j: (0, 0)),                  # gain*dW
        ],
        out_specs=pl.BlockSpec((BB * C, hw_tile), lambda b, j: (b, j)),
        compiler_params=pltpu.CompilerParams(
            dimension_semantics=("parallel", "parallel"),
            vmem_limit_bytes=vmem_limit),
    )(coef, x2, eps_sum, gbias, dwg)

    if pad:
        out = out[:, :HW]
    return out.reshape(B, C, H, W)


def mc_score_edm_forward(params, x, y, key, *, t, n_mc_samples, n_chunks=1):
    """Mirrors MC_Score_EDM.forward.  The reference's count-weighted chunk
    accumulation sum_i (chunk_i / n_mc) * mean_over_chunk_i is exactly the mean
    over ALL n_mc samples, so all chunks fold into a single pallas_call."""
    assert n_chunks > 0
    out = score_y_x_pallas(params, x, y, key, t=t, n_samples=n_mc_samples)
    return out.astype(x.dtype)


def make_params(key, channels, label_dim):
    """Deterministic synthetic weights standing in for the pickled EMA nets."""
    # TODO(synk): the real EDM UNets from network_pkl_cond/uncond are not
    # reproducible in-script; replaced by 1x1-conv + class-embedding denoisers.
    k = jax.random.split(key, 5)
    scale = 1.0 / jnp.sqrt(channels)
    return {
        "w_cond": jax.random.normal(k[0], (channels, channels), jnp.float32) * scale,
        "b_cond": jax.random.normal(k[1], (channels, 1), jnp.float32) * 0.1,
        "w_uncond": jax.random.normal(k[2], (channels, channels), jnp.float32) * scale,
        "b_uncond": jax.random.normal(k[3], (channels, 1), jnp.float32) * 0.1,
        "emb_cond": jax.random.normal(k[4], (label_dim, channels), jnp.float32) * 0.1,
    }


if __name__ == "__main__":
    B, C, H, W = 2, 4, 16, 16
    LABEL_DIM = 10
    T = 0.3
    N_MC = 8
    N_CHUNKS = 2

    root = jax.random.PRNGKey(0)
    k_params, k_x, k_y, k_noise = jax.random.split(root, 4)

    params = make_params(k_params, C, LABEL_DIM)
    x = jax.random.normal(k_x, (B, C, H, W), dtype=jnp.float32)
    y = jax.random.randint(k_y, (B,), 0, LABEL_DIM)

    out = mc_score_edm_forward(params, x, y, k_noise,
                               t=T, n_mc_samples=N_MC, n_chunks=N_CHUNKS)
    out = jax.block_until_ready(out)
    assert out.shape == (B, C, H, W) and out.dtype == x.dtype
    assert bool(jnp.all(jnp.isfinite(out)))
    print("KERNEL_OK")
</pallas_src>

<mosaic_0001>
module attributes {stable_mosaic.version = 11 : i64} {
  func.func @_mc_score_kernel(%arg0: i32, %arg1: i32, %arg2: memref<2xf32, #tpu.memory_space<smem>>, %arg3: memref<8x256xf32, #tpu.memory_space<vmem>>, %arg4: memref<8x256xf32, #tpu.memory_space<vmem>>, %arg5: memref<8x1xf32, #tpu.memory_space<vmem>>, %arg6: memref<4x4xf32, #tpu.memory_space<vmem>>, %arg7: memref<8x256xf32, #tpu.memory_space<vmem>>) attributes {dimension_semantics = [#tpu.dimension_semantics<parallel>, #tpu.dimension_semantics<parallel>], iteration_bounds = array<i64: 1, 1>, scalar_prefetch = 0 : i64, scratch_operands = 0 : i64, tpu.core_type = #tpu.core_type<tc>, window_params = [{transform_indices = @transform_0, window_bounds = array<i64: 2>}, {transform_indices = @transform_1, window_bounds = array<i64: 8, 256>}, {transform_indices = @transform_2, window_bounds = array<i64: 8, 256>}, {transform_indices = @transform_3, window_bounds = array<i64: 8, 1>}, {pipeline_mode = #tpu.pipeline_mode<synchronous>, transform_indices = @transform_4, window_bounds = array<i64: 4, 4>}, {transform_indices = @transform_5, window_bounds = array<i64: 8, 256>}]} {
    %c0 = arith.constant 0 : index
    %0 = memref.load %arg2[%c0] : memref<2xf32, #tpu.memory_space<smem>>
    %c1 = arith.constant 1 : index
    %1 = memref.load %arg2[%c1] : memref<2xf32, #tpu.memory_space<smem>>
    %c0_0 = arith.constant 0 : index
    %c0_1 = arith.constant 0 : index
    %2 = vector.load %arg3[%c0_0, %c0_1] : memref<8x256xf32, #tpu.memory_space<vmem>>, vector<8x256xf32>
    %c0_2 = arith.constant 0 : index
    %c0_3 = arith.constant 0 : index
    %3 = vector.load %arg4[%c0_2, %c0_3] : memref<8x256xf32, #tpu.memory_space<vmem>>, vector<8x256xf32>
    %4 = vector.broadcast %0 : f32 to vector<8x256xf32>
    %5 = arith.mulf %4, %2 : vector<8x256xf32>
    %6 = vector.broadcast %1 : f32 to vector<8x256xf32>
    %7 = arith.mulf %6, %3 : vector<8x256xf32>
    %8 = arith.addf %5, %7 : vector<8x256xf32>
    %c0_4 = arith.constant 0 : index
    %c0_5 = arith.constant 0 : index
    %9 = vector.load %arg6[%c0_4, %c0_5] : memref<4x4xf32, #tpu.memory_space<vmem>>, vector<4x4xf32>
    %c0_6 = arith.constant 0 : index
    %c0_7 = arith.constant 0 : index
    %10 = vector.load %arg5[%c0_6, %c0_7] : memref<8x1xf32, #tpu.memory_space<vmem>>, vector<8x1xf32>
    %11 = vector.extract_strided_slice %8 {offsets = [0, 0], sizes = [4, 256], strides = [1, 1]} : vector<8x256xf32> to vector<4x256xf32>
    %12 = vector.extract_strided_slice %9 {offsets = [0, 0], sizes = [4, 1], strides = [1, 1]} : vector<4x4xf32> to vector<4x1xf32>
    %13 = vector.extract_strided_slice %11 {offsets = [0, 0], sizes = [1, 256], strides = [1, 1]} : vector<4x256xf32> to vector<1x256xf32>
    %14 = vector.broadcast %12 : vector<4x1xf32> to vector<4x256xf32>
    %15 = vector.broadcast %13 : vector<1x256xf32> to vector<4x256xf32>
    %16 = arith.mulf %14, %15 : vector<4x256xf32>
    %17 = vector.extract_strided_slice %9 {offsets = [0, 1], sizes = [4, 1], strides = [1, 1]} : vector<4x4xf32> to vector<4x1xf32>
    %18 = vector.extract_strided_slice %11 {offsets = [1, 0], sizes = [1, 256], strides = [1, 1]} : vector<4x256xf32> to vector<1x256xf32>
    %19 = vector.broadcast %17 : vector<4x1xf32> to vector<4x256xf32>
    %20 = vector.broadcast %18 : vector<1x256xf32> to vector<4x256xf32>
    %21 = arith.mulf %19, %20 : vector<4x256xf32>
    %22 = arith.addf %16, %21 : vector<4x256xf32>
    %23 = vector.extract_strided_slice %9 {offsets = [0, 2], sizes = [4, 1], strides = [1, 1]} : vector<4x4xf32> to vector<4x1xf32>
    %24 = vector.extract_strided_slice %11 {offsets = [2, 0], sizes = [1, 256], strides = [1, 1]} : vector<4x256xf32> to vector<1x256xf32>
    %25 = vector.broadcast %23 : vector<4x1xf32> to vector<4x256xf32>
    %26 = vector.broadcast %24 : vector<1x256xf32> to vector<4x256xf32>
    %27 = arith.mulf %25, %26 : vector<4x256xf32>
    %28 = arith.addf %22, %27 : vector<4x256xf32>
    %29 = vector.extract_strided_slice %9 {offsets = [0, 3], sizes = [4, 1], strides = [1, 1]} : vector<4x4xf32> to vector<4x1xf32>
    %30 = vector.extract_strided_slice %11 {offsets = [3, 0], sizes = [1, 256], strides = [1, 1]} : vector<4x256xf32> to vector<1x256xf32>
    %31 = vector.broadcast %29 : vector<4x1xf32> to vector<4x256xf32>
    %32 = vector.broadcast %30 : vector<1x256xf32> to vector<4x256xf32>
    %33 = arith.mulf %31, %32 : vector<4x256xf32>
    %34 = arith.addf %28, %33 : vector<4x256xf32>
    %35 = vector.extract_strided_slice %8 {offsets = [4, 0], sizes = [4, 256], strides = [1, 1]} : vector<8x256xf32> to vector<4x256xf32>
    %36 = vector.extract_strided_slice %9 {offsets = [0, 0], sizes = [4, 1], strides = [1, 1]} : vector<4x4xf32> to vector<4x1xf32>
    %37 = vector.extract_strided_slice %35 {offsets = [0, 0], sizes = [1, 256], strides = [1, 1]} : vector<4x256xf32> to vector<1x256xf32>
    %38 = vector.broadcast %36 : vector<4x1xf32> to vector<4x256xf32>
    %39 = vector.broadcast %37 : vector<1x256xf32> to vector<4x256xf32>
    %40 = arith.mulf %38, %39 : vector<4x256xf32>
    %41 = vector.extract_strided_slice %9 {offsets = [0, 1], sizes = [4, 1], strides = [1, 1]} : vector<4x4xf32> to vector<4x1xf32>
    %42 = vector.extract_strided_slice %35 {offsets = [1, 0], sizes = [1, 256], strides = [1, 1]} : vector<4x256xf32> to vector<1x256xf32>
    %43 = vector.broadcast %41 : vector<4x1xf32> to vector<4x256xf32>
    %44 = vector.broadcast %42 : vector<1x256xf32> to vector<4x256xf32>
    %45 = arith.mulf %43, %44 : vector<4x256xf32>
    %46 = arith.addf %40, %45 : vector<4x256xf32>
    %47 = vector.extract_strided_slice %9 {offsets = [0, 2], sizes = [4, 1], strides = [1, 1]} : vector<4x4xf32> to vector<4x1xf32>
    %48 = vector.extract_strided_slice %35 {offsets = [2, 0], sizes = [1, 256], strides = [1, 1]} : vector<4x256xf32> to vector<1x256xf32>
    %49 = vector.broadcast %47 : vector<4x1xf32> to vector<4x256xf32>
    %50 = vector.broadcast %48 : vector<1x256xf32> to vector<4x256xf32>
    %51 = arith.mulf %49, %50 : vector<4x256xf32>
    %52 = arith.addf %46, %51 : vector<4x256xf32>
    %53 = vector.extract_strided_slice %9 {offsets = [0, 3], sizes = [4, 1], strides = [1, 1]} : vector<4x4xf32> to vector<4x1xf32>
    %54 = vector.extract_strided_slice %35 {offsets = [3, 0], sizes = [1, 256], strides = [1, 1]} : vector<4x256xf32> to vector<1x256xf32>
    %55 = vector.broadcast %53 : vector<4x1xf32> to vector<4x256xf32>
    %56 = vector.broadcast %54 : vector<1x256xf32> to vector<4x256xf32>
    %57 = arith.mulf %55, %56 : vector<4x256xf32>
    %58 = arith.addf %52, %57 : vector<4x256xf32>
    %59 = tpu.concatenate %34, %58 in 0 : vector<4x256xf32>, vector<4x256xf32> -> vector<8x256xf32>
    %60 = vector.broadcast %10 : vector<8x1xf32> to vector<8x256xf32>
    %61 = arith.addf %59, %60 : vector<8x256xf32>
    %c0_8 = arith.constant 0 : index
    %c0_9 = arith.constant 0 : index
    %62 = vector.load %arg7[%c0_8, %c0_9] : memref<8x256xf32, #tpu.memory_space<vmem>>, vector<8x256xf32>
    tpu.vector_store %arg7[%c0_8, %c0_9], %61 {strides = array<i32>} : memref<8x256xf32, #tpu.memory_space<vmem>>, vector<8x256xf32>,
    return
  }
  func.func @transform_0(%arg0: i32, %arg1: i32) -> i32 {
    %c0_i32 = arith.constant 0 : i32
    %c0_i32_0 = arith.constant 0 : i32
    return %c0_i32 : i32
  }
  func.func @transform_1(%arg0: i32, %arg1: i32) -> (i32, i32) {
    %c0_i32 = arith.constant 0 : i32
    return %arg0, %arg1 : i32, i32
  }
  func.func @transform_2(%arg0: i32, %arg1: i32) -> (i32, i32) {
    %c0_i32 = arith.constant 0 : i32
    return %arg0, %arg1 : i32, i32
  }
  func.func @transform_3(%arg0: i32, %arg1: i32) -> (i32, i32) {
    %c0_i32 = arith.constant 0 : i32
    %c0_i32_0 = arith.constant 0 : i32
    return %arg0, %c0_i32 : i32, i32
  }
  func.func @transform_4(%arg0: i32, %arg1: i32) -> (i32, i32) {
    %c0_i32 = arith.constant 0 : i32
    %c0_i32_0 = arith.constant 0 : i32
    %c0_i32_1 = arith.constant 0 : i32
    return %c0_i32, %c0_i32_0 : i32, i32
  }
  func.func @transform_5(%arg0: i32, %arg1: i32) -> (i32, i32) {
    %c0_i32 = arith.constant 0 : i32
    return %arg0, %arg1 : i32, i32
  }
}

</mosaic_0001>

<llo_original>
// kernel: tpu_custom_call.1
$region0: #{tpu_custom_call.1}
  #allocation0 [shape = 'u32[]', space=smem, size = 0x4, offset = 0x4, fixed_abs, tag = 'smem constant byte address 0x4 - core index']
  #allocation1 [shape = 'u32[144,128]{1,0:T(1,128)}', space=vmem, size = 0x12000, scoped, tag = 'internal scratch']
  %s0 = inlined_call_operand.vmem [shape: f32[2], index: 0, kind: input, shape index: {}]
  %s1 = inlined_call_operand.hbm [shape: f32[8,256], index: 1, kind: input, shape index: {}]
  %s2 = inlined_call_operand.hbm [shape: f32[8,256], index: 2, kind: input, shape index: {}]
  %s3 = inlined_call_operand.vmem [shape: f32[8,1], index: 3, kind: input, shape index: {}]
  %s4 = inlined_call_operand.vmem [shape: f32[4,4], index: 4, kind: input, shape index: {}]
  %s5 = inlined_call_operand.hbm [shape: f32[8,256], index: 5, kind: output, shape index: {}]
  %s6 = sld [smem:[#allocation0]]
  $region42: #{tpu_custom_call.1} parent=0
    _
  %s8 = ssub.s32 1, %s6
  %s9 = scalar_select 0, %s8, %s6
  $region1: #{tpu_custom_call.1} parent=0
    #allocation2 [shape = 'u8[512]{0}', space=smem, size = 0x200, scoped, tag = 'input window, operand 0, single buffered']
    #allocation3 [shape = 's32[1]{0}', space=sflag, size = 0x4, scoped, tag = 'scoped memory for tpu_custom_call.1']
    #allocation4 [shape = 's32[1]{0}', space=sflag, size = 0x4, scoped, tag = 'scoped memory for tpu_custom_call.1']
    #allocation5 [shape = 's32[1]{0}', space=sflag, size = 0x4, scoped, tag = 'scoped memory for tpu_custom_call.1']
    #allocation6 [shape = 'u8[8192]{0}', space=vmem, size = 0x2000, scoped, tag = 'input window, operand 1, single buffered']
    #allocation7 [shape = 'u8[8192]{0}', space=vmem, size = 0x2000, scoped, tag = 'input window, operand 2, single buffered']
    #allocation8 [shape = 's32[1]{0}', space=sflag, size = 0x4, scoped, tag = 'scoped memory for tpu_custom_call.1']
    #allocation9 [shape = 'u8[8192]{0}', space=vmem, size = 0x2000, scoped, tag = 'output window, operand 0, single buffered']
    %10 = vsyncpa [#allocation5], 0
    %11 = vsyncpa [#allocation3], 0
    %12 = vsyncpa [#allocation8], 0
    %13 = vsyncpa [#allocation4], 0
    // Predicated region
    $region2: #{tpu_custom_call.1} parent=1 // pred_check
      _
    $region3: #{tpu_custom_call.1} parent=1 // pred_check_branch
      %15 = sbr.rel (0) target = $region5
    $region4: #{tpu_custom_call.1} parent=1 // pred_region
      %s17 = ssub.s32 16, 16
      %18 = vsyncadd [#allocation5], %s17
      %s20 = sshll.u32 %s0, 4
      %s21 = int_to_ptr.vmem [resolvable:$true] %s20
      %23 = dma.vmem_to_smem %s21, 16, [#allocation2], [#allocation5]
    $region5: #{tpu_custom_call.1} parent=1 // pred_fallthru
      _
    // Predicated region
    $region6: #{tpu_custom_call.1} parent=1 // pred_check
      _
    $region7: #{tpu_custom_call.1} parent=1 // pred_check_branch
      %25 = sbr.rel (0) target = $region9
    $region8: #{tpu_custom_call.1} parent=1 // pred_region
      %s27 = ssub.s32 256, 256
      %28 = vsyncadd [#allocation3], %s27
      %s30 = sshll.u32 [#allocation6], 4
      %s31 = int_to_ptr.vmem [resolvable:$true] %s30
      %33 = dma.hbm_to_vmem [thread:$0]  %s1, 256, %s31, [#allocation3]
    $region9: #{tpu_custom_call.1} parent=1 // pred_fallthru
      _
    // Predicated region
    $region10: #{tpu_custom_call.1} parent=1 // pred_check
      _
    $region11: #{tpu_custom_call.1} parent=1 // pred_check_branch
      %35 = sbr.rel (0) target = $region13
    $region12: #{tpu_custom_call.1} parent=1 // pred_region
      %s37 = ssub.s32 256, 256
      %38 = vsyncadd [#allocation8], %s37
      %s40 = sshll.u32 [#allocation7], 4
      %s41 = int_to_ptr.vmem [resolvable:$true] %s40
      %43 = dma.hbm_to_vmem [thread:$0]  %s2, 256, %s41, [#allocation8]
    $region13: #{tpu_custom_call.1} parent=1 // pred_fallthru
      _
    // Predicated region
    $region14: #{tpu_custom_call.1} parent=1 // pred_check
      _
    $region15: #{tpu_custom_call.1} parent=1 // pred_check_branch
      %45 = sbr.rel (0) target = $region17
    $region16: #{tpu_custom_call.1} parent=1 // pred_region
      _
    $region17: #{tpu_custom_call.1} parent=1 // pred_fallthru
      _
    // Predicated region
    $region18: #{tpu_custom_call.1} parent=1 // pred_check
      _
    $region19: #{tpu_custom_call.1} parent=1 // pred_check_branch
      %47 = sbr.rel (0) target = $region21
    $region20: #{tpu_custom_call.1} parent=1 // pred_region
      _
    $region21: #{tpu_custom_call.1} parent=1 // pred_fallthru
      _
    // Predicated region
    $region22: #{tpu_custom_call.1} parent=1 // pred_check
      _
    $region23: #{tpu_custom_call.1} parent=1 // pred_check_branch
      %49 = sbr.rel (0) target = $region25
    $region24: #{tpu_custom_call.1} parent=1 // pred_region
      %50 = dma.done [#allocation5], 16
    $region25: #{tpu_custom_call.1} parent=1 // pred_fallthru
      _
    // Predicated region
    $region26: #{tpu_custom_call.1} parent=1 // pred_check
      _
    $region27: #{tpu_custom_call.1} parent=1 // pred_check_branch
      %52 = sbr.rel (0) target = $region29
    $region28: #{tpu_custom_call.1} parent=1 // pred_region
      %53 = dma.done [#allocation3], 256
    $region29: #{tpu_custom_call.1} parent=1 // pred_fallthru
      _
    // Predicated region
    $region30: #{tpu_custom_call.1} parent=1 // pred_check
      _
    $region31: #{tpu_custom_call.1} parent=1 // pred_check_branch
      %55 = sbr.rel (0) target = $region33
    $region32: #{tpu_custom_call.1} parent=1 // pred_region
      %56 = dma.done [#allocation8], 256
    $region33: #{tpu_custom_call.1} parent=1 // pred_fallthru
      _
    %57 = sfence
    %s58 = sld [smem:[#allocation2]]
    %s59 = sld [smem:[#allocation2 + $0x1]]
    %v60 = vld [vmem:[#allocation6] sm:$0xff]
    %v61 = vld [vmem:[#allocation6 + $0x8] sm:$0xff]
    %v62 = vld [vmem:[#allocation7] sm:$0xff]
    %v63 = vld [vmem:[#allocation7 + $0x8] sm:$0xff]
    %v64 = vstv %s58
    %v65 = vmul.f32 %v64, %v60
    %v66 = vmul.f32 %v64, %v61
    %v67 = vstv %s59
    %v68 = vmul.f32 %v67, %v62
    %v69 = vmul.f32 %v67, %v63
    %v70 = vadd.f32 %v65, %v68
    %v71 = vadd.f32 %v66, %v69
    %v72 = vld [vmem:[%s4] sm:$0xf]
    %v73 = vld [vmem:[%s3] sm:$0xff]
    %75 = vset.pattern.permute.xlu0 0
    %76 = vperm.xlu0 %75, %v72
    %v77 = vpop.permute.xlu0 %76
    %v79 = vlaneseq
    %v80 = vshrl.u32 %v79, 7
    %v81 = vsub.s32 0, %v80
    %v82 = vrot.slane %v70, %v81
    %v83 = vlaneseq
    %v84 = vshrl.u32 %v83, 7
    %v85 = vsub.s32 0, %v84
    %v86 = vrot.slane %v71, %v85
    %v87 = vmul.f32 %v77, %v82
    %v88 = vmul.f32 %v77, %v86
    %89 = vset.pattern.permute.xlu0 1
    %90 = vperm.xlu0 %89, %v72
    %v91 = vpop.permute.xlu0 %90
    %v93 = vlaneseq
    %v94 = vshrl.u32 %v93, 7
    %v95 = vsub.s32 1, %v94
    %v96 = vrot.slane %v70, %v95
    %v97 = vlaneseq
    %v98 = vshrl.u32 %v97, 7
    %v99 = vsub.s32 1, %v98
    %v100 = vrot.slane %v71, %v99
    %v101 = vmul.f32 %v91, %v96
    %v102 = vmul.f32 %v91, %v100
    %v103 = vadd.f32 %v87, %v101
    %v104 = vadd.f32 %v88, %v102
    %105 = vset.pattern.permute.xlu0 2
    %106 = vperm.xlu0 %105, %v72
    %v107 = vpop.permute.xlu0 %106
    %v109 = vlaneseq
    %v110 = vshrl.u32 %v109, 7
    %v111 = vsub.s32 2, %v110
    %v112 = vrot.slane %v70, %v111
    %v113 = vlaneseq
    %v114 = vshrl.u32 %v113, 7
    %v115 = vsub.s32 2, %v114
    %v116 = vrot.slane %v71, %v115
    %v117 = vmul.f32 %v107, %v112
    %v118 = vmul.f32 %v107, %v116
    %v119 = vadd.f32 %v103, %v117
    %v120 = vadd.f32 %v104, %v118
    %121 = vset.pattern.permute.xlu0 3
    %122 = vperm.xlu0 %121, %v72
    %v123 = vpop.permute.xlu0 %122
    %v125 = vlaneseq
    %v126 = vshrl.u32 %v125, 7
    %v127 = vsub.s32 3, %v126
    %v128 = vrot.slane %v70, %v127
    %v129 = vlaneseq
    %v130 = vshrl.u32 %v129, 7
    %v131 = vsub.s32 3, %v130
    %v132 = vrot.slane %v71, %v131
    %v133 = vmul.f32 %v123, %v128
    %v134 = vmul.f32 %v123, %v132
    %v135 = vadd.f32 %v119, %v133
    %v136 = vadd.f32 %v120, %v134
    %v137 = vlaneseq
    %v138 = vshrl.u32 %v137, 7
    %v139 = vsub.s32 4, %v138
    %v140 = vrot.slane %v70, %v139
    %v141 = vlaneseq
    %v142 = vshrl.u32 %v141, 7
    %v143 = vsub.s32 4, %v142
    %v144 = vrot.slane %v71, %v143
    %v145 = vmul.f32 %v77, %v140
    %v146 = vmul.f32 %v77, %v144
    %v147 = vlaneseq
    %v148 = vshrl.u32 %v147, 7
    %v149 = vsub.s32 5, %v148
    %v150 = vrot.slane %v70, %v149
    %v151 = vlaneseq
    %v152 = vshrl.u32 %v151, 7
    %v153 = vsub.s32 5, %v152
    %v154 = vrot.slane %v71, %v153
    %v155 = vmul.f32 %v91, %v150
    %v156 = vmul.f32 %v91, %v154
    %v157 = vadd.f32 %v145, %v155
    %v158 = vadd.f32 %v146, %v156
    %v159 = vlaneseq
    %v160 = vshrl.u32 %v159, 7
    %v161 = vsub.s32 6, %v160
    %v162 = vrot.slane %v70, %v161
    %v163 = vlaneseq
    %v164 = vshrl.u32 %v163, 7
    %v165 = vsub.s32 6, %v164
    %v166 = vrot.slane %v71, %v165
    %v167 = vmul.f32 %v107, %v162
    %v168 = vmul.f32 %v107, %v166
    %v169 = vadd.f32 %v157, %v167
    %v170 = vadd.f32 %v158, %v168
    %v171 = vlaneseq
    %v172 = vshrl.u32 %v171, 7
    %v173 = vsub.s32 7, %v172
    %v174 = vrot.slane %v70, %v173
    %v175 = vlaneseq
    %v176 = vshrl.u32 %v175, 7
    %v177 = vsub.s32 7, %v176
    %v178 = vrot.slane %v71, %v177
    %v179 = vmul.f32 %v123, %v174
    %v180 = vmul.f32 %v123, %v178
    %v181 = vadd.f32 %v169, %v179
    %v182 = vadd.f32 %v170, %v180
    %v185 = vrot.slane %v181, 4
    %v186 = vrot.slane %v182, 4
    %vm189 = vcmask 1043456
    %v190 = vsel %vm189, %v135, %v185
    %v191 = vsel %vm189, %v136, %v186
    %193 = vset.pattern.permute.xlu0 0
    %194 = vperm.xlu0 %193, %v73
    %v195 = vpop.permute.xlu0 %194
    %v197 = vadd.f32 %v190, %v195
    %v198 = vadd.f32 %v191, %v195
    %199 = vst [vmem:[#allocation9] sm:$0xff] %v197
    %200 = vst [vmem:[#allocation9 + $0x8] sm:$0xff] %v198
    // Predicated region
    $region34: #{tpu_custom_call.1} parent=1 // pred_check
      _
    $region35: #{tpu_custom_call.1} parent=1 // pred_check_branch
      %202 = sbr.rel (0) target = $region37
    $region36: #{tpu_custom_call.1} parent=1 // pred_region
      %s204 = ssub.s32 256, 256
      %205 = vsyncadd [#allocation4], %s204
      %s207 = sshll.u32 [#allocation9], 4
      %s208 = int_to_ptr.vmem [resolvable:$true] %s207
      %210 = dma.vmem_to_hbm [thread:$0]  %s208, 256, %s5, [#allocation4]
    $region37: #{tpu_custom_call.1} parent=1 // pred_fallthru
      _
    // Predicated region
    $region38: #{tpu_custom_call.1} parent=1 // pred_check
      _
    $region39: #{tpu_custom_call.1} parent=1 // pred_check_branch
      %212 = sbr.rel (0) target = $region41
    $region40: #{tpu_custom_call.1} parent=1 // pred_region
      %213 = dma.done [#allocation4], 256
    $region41: #{tpu_custom_call.1} parent=1 // pred_fallthru
      _
    %214 = vsyncpa [#allocation3], 1
    %215 = vsyncpa [#allocation8], 1
    %216 = vsyncpa [#allocation4], 1
    %217 = vsyncpa [#allocation5], 1

</llo_original>
